<compile_context>
chip_gen: v6e
topology: v6e:2x2x1
jax: 0.10.0
libtpu: 0.0.40
codegen_flags: <defaults>
</compile_context>

<pallas_src>
import jax
import jax.numpy as jnp
from jax.experimental import pallas as pl
from jax.experimental.pallas import tpu as pltpu


def _net_kernel(xT_ref, w1_ref, b1_ref, w2_ref, b2_ref,
                w20_ref, b20_ref, w3_ref, b3_ref, o_ref):
    """One batch-tile of the fused forward pass.

    xT_ref : (in_dim, TB)   activations, feature-major (batch on lanes)
    wK_ref : (fan_out, fan_in) PyTorch-layout weights
    bK_ref : (fan_out, 1)   biases (broadcast across the lane/batch axis)
    o_ref  : (out_dim, TB)
    """
    xT = xT_ref[...]                                   # (in_dim, TB)
    tb = xT.shape[1]

    # Load each weight / bias exactly once (no re-loads inside the fc20 chain).
    w1, b1 = w1_ref[...], b1_ref[...]
    w2, b2 = w2_ref[...], b2_ref[...]
    w20, b20 = w20_ref[...], b20_ref[...]
    w3, b3 = w3_ref[...], b3_ref[...]

    h = jnp.tanh(jnp.dot(w1, xT, preferred_element_type=jnp.float32) + b1)   # (10, TB)
    h = jnp.tanh(jnp.dot(w2, h, preferred_element_type=jnp.float32) + b2)    # (5, TB)

    # fc20 applied four times with shared weights; broadcast its bias once.
    b20_full = jnp.broadcast_to(b20, (b20.shape[0], tb))                     # (5, TB)
    for _ in range(4):
        h = jnp.tanh(jnp.dot(w20, h, preferred_element_type=jnp.float32) + b20_full)

    out = jnp.dot(w3, h, preferred_element_type=jnp.float32) + b3            # (out_dim, TB)
    o_ref[...] = out.astype(o_ref.dtype)


def net_forward(x, params, *, tb=2048):
    """Fused Net forward on TPU.

    x: (batch, in_dim) float32
    params: dict with w1,b1,w2,b2,w20,b20,w3,b3;
            weights as (fan_out, fan_in), biases as (fan_out, 1)  (PyTorch layout)
    tb: batch tile (rows per grid step); multiple of 128 recommended.
    Returns (batch, out_dim) float32.
    """
    batch, in_dim = x.shape
    out_dim = params["w3"].shape[0]

    # Feature-major layout: batch becomes the lane (last, fast) axis.
    xT = x.T                                            # (in_dim, batch)

    if batch <= tb:
        TB = batch                                      # single block; full-dim exemption
        padded = batch
    else:
        TB = tb                                         # multiple of 128
        pad = (-batch) % TB
        if pad:
            xT = jnp.pad(xT, ((0, 0), (0, pad)))
        padded = batch + pad

    grid = (padded // TB,)

    weight_ops = (params["w1"], params["b1"],
                  params["w2"], params["b2"],
                  params["w20"], params["b20"],
                  params["w3"], params["b3"])

    def _const_spec(arr):
        # NOTE: bind ndim eagerly (avoids the late-binding closure bug).
        nd = arr.ndim
        return pl.BlockSpec(arr.shape, lambda i, _nd=nd: (0,) * _nd)

    in_specs = [pl.BlockSpec((in_dim, TB), lambda i: (0, i))]     # x tile
    in_specs += [_const_spec(op) for op in weight_ops]            # resident params

    out = pl.pallas_call(
        _net_kernel,
        out_shape=jax.ShapeDtypeStruct((out_dim, padded), jnp.float32),
        grid=grid,
        in_specs=in_specs,
        out_specs=pl.BlockSpec((out_dim, TB), lambda i: (0, i)),
        compiler_params=pltpu.CompilerParams(
            dimension_semantics=("parallel",)),
    )(xT, *weight_ops)

    # Back to the PyTorch-facing (batch, out_dim) layout; drop any padding.
    return out[:, :batch].T


def init_params(key, in_dim, out_dim=2):
    """PyTorch nn.Linear default init: uniform(-1/sqrt(fan_in), 1/sqrt(fan_in)).
    Weights stored as (fan_out, fan_in), biases as (fan_out, 1)."""
    def linear_init(k, fan_in, fan_out):
        kw, kb = jax.random.split(k)
        bound = 1.0 / jnp.sqrt(jnp.float32(fan_in))
        w = jax.random.uniform(kw, (fan_out, fan_in), jnp.float32, -bound, bound)
        b = jax.random.uniform(kb, (fan_out, 1), jnp.float32, -bound, bound)
        return w, b

    k1, k2, k20, k3 = jax.random.split(key, 4)
    w1, b1 = linear_init(k1, in_dim, 10)
    w2, b2 = linear_init(k2, 10, 5)
    w20, b20 = linear_init(k20, 5, 5)
    w3, b3 = linear_init(k3, 5, out_dim)
    return dict(w1=w1, b1=b1, w2=w2, b2=b2, w20=w20, b20=b20, w3=w3, b3=b3)


def net_forward_ref(x, p):
    """Pure-JAX reference (standard row-major math) for correctness checking."""
    def lin(h, w, b):
        return h @ w.T + b[:, 0]
    h = jnp.tanh(lin(x, p["w1"], p["b1"]))
    h = jnp.tanh(lin(h, p["w2"], p["b2"]))
    for _ in range(4):
        h = jnp.tanh(lin(h, p["w20"], p["b20"]))
    return lin(h, p["w3"], p["b3"])


if __name__ == "__main__":
    key = jax.random.PRNGKey(0)
    k_param, k_x1, k_x2 = jax.random.split(key, 3)

    in_dim, out_dim = 16, 2
    params = init_params(k_param, in_dim, out_dim)

    # Small batch: single block (full-dim exemption path).
    batch = 8
    x = jax.random.normal(k_x1, (batch, in_dim), dtype=jnp.float32)
    out = jax.block_until_ready(net_forward(x, params))
    ref = net_forward_ref(x, params)
    assert out.shape == (batch, out_dim)
    assert jnp.allclose(out, ref, atol=1e-5, rtol=1e-5), "mismatch (small batch)"

    # Larger batch: exercises the gridded / padded pipeline path (TB=128).
    batch2 = 400
    x2 = jax.random.normal(k_x2, (batch2, in_dim), dtype=jnp.float32)
    out2 = jax.block_until_ready(net_forward(x2, params, tb=128))
    ref2 = net_forward_ref(x2, params)
    assert out2.shape == (batch2, out_dim)
    assert jnp.allclose(out2, ref2, atol=1e-5, rtol=1e-5), "mismatch (gridded batch)"

    print("KERNEL_OK")
</pallas_src>

<mosaic_0001>
module attributes {stable_mosaic.version = 11 : i64} {
  func.func @_net_kernel(%arg0: i32, %arg1: memref<16x8xf32, #tpu.memory_space<vmem>>, %arg2: memref<10x16xf32, #tpu.memory_space<vmem>>, %arg3: memref<10x1xf32, #tpu.memory_space<vmem>>, %arg4: memref<5x10xf32, #tpu.memory_space<vmem>>, %arg5: memref<5x1xf32, #tpu.memory_space<vmem>>, %arg6: memref<5x5xf32, #tpu.memory_space<vmem>>, %arg7: memref<5x1xf32, #tpu.memory_space<vmem>>, %arg8: memref<2x5xf32, #tpu.memory_space<vmem>>, %arg9: memref<2x1xf32, #tpu.memory_space<vmem>>, %arg10: memref<2x8xf32, #tpu.memory_space<vmem>>) attributes {dimension_semantics = [#tpu.dimension_semantics<parallel>], iteration_bounds = array<i64: 1>, scalar_prefetch = 0 : i64, scratch_operands = 0 : i64, tpu.core_type = #tpu.core_type<tc>, window_params = [{transform_indices = @transform_0, window_bounds = array<i64: 16, 8>}, {pipeline_mode = #tpu.pipeline_mode<synchronous>, transform_indices = @transform_1, window_bounds = array<i64: 10, 16>}, {pipeline_mode = #tpu.pipeline_mode<synchronous>, transform_indices = @transform_2, window_bounds = array<i64: 10, 1>}, {pipeline_mode = #tpu.pipeline_mode<synchronous>, transform_indices = @transform_3, window_bounds = array<i64: 5, 10>}, {pipeline_mode = #tpu.pipeline_mode<synchronous>, transform_indices = @transform_4, window_bounds = array<i64: 5, 1>}, {pipeline_mode = #tpu.pipeline_mode<synchronous>, transform_indices = @transform_5, window_bounds = array<i64: 5, 5>}, {pipeline_mode = #tpu.pipeline_mode<synchronous>, transform_indices = @transform_6, window_bounds = array<i64: 5, 1>}, {pipeline_mode = #tpu.pipeline_mode<synchronous>, transform_indices = @transform_7, window_bounds = array<i64: 2, 5>}, {pipeline_mode = #tpu.pipeline_mode<synchronous>, transform_indices = @transform_8, window_bounds = array<i64: 2, 1>}, {transform_indices = @transform_9, window_bounds = array<i64: 2, 8>}]} {
    %c0 = arith.constant 0 : index
    %c0_0 = arith.constant 0 : index
    %0 = vector.load %arg1[%c0, %c0_0] : memref<16x8xf32, #tpu.memory_space<vmem>>, vector<16x8xf32>
    %c0_1 = arith.constant 0 : index
    %c0_2 = arith.constant 0 : index
    %1 = vector.load %arg2[%c0_1, %c0_2] : memref<10x16xf32, #tpu.memory_space<vmem>>, vector<10x16xf32>
    %c0_3 = arith.constant 0 : index
    %c0_4 = arith.constant 0 : index
    %2 = vector.load %arg3[%c0_3, %c0_4] : memref<10x1xf32, #tpu.memory_space<vmem>>, vector<10x1xf32>
    %c0_5 = arith.constant 0 : index
    %c0_6 = arith.constant 0 : index
    %3 = vector.load %arg4[%c0_5, %c0_6] : memref<5x10xf32, #tpu.memory_space<vmem>>, vector<5x10xf32>
    %c0_7 = arith.constant 0 : index
    %c0_8 = arith.constant 0 : index
    %4 = vector.load %arg5[%c0_7, %c0_8] : memref<5x1xf32, #tpu.memory_space<vmem>>, vector<5x1xf32>
    %c0_9 = arith.constant 0 : index
    %c0_10 = arith.constant 0 : index
    %5 = vector.load %arg6[%c0_9, %c0_10] : memref<5x5xf32, #tpu.memory_space<vmem>>, vector<5x5xf32>
    %c0_11 = arith.constant 0 : index
    %c0_12 = arith.constant 0 : index
    %6 = vector.load %arg7[%c0_11, %c0_12] : memref<5x1xf32, #tpu.memory_space<vmem>>, vector<5x1xf32>
    %c0_13 = arith.constant 0 : index
    %c0_14 = arith.constant 0 : index
    %7 = vector.load %arg8[%c0_13, %c0_14] : memref<2x5xf32, #tpu.memory_space<vmem>>, vector<2x5xf32>
    %c0_15 = arith.constant 0 : index
    %c0_16 = arith.constant 0 : index
    %8 = vector.load %arg9[%c0_15, %c0_16] : memref<2x1xf32, #tpu.memory_space<vmem>>, vector<2x1xf32>
    %cst = arith.constant dense<0.000000e+00> : vector<10x8xf32>
    %9 = tpu.matmul %1, %0, %cst {dimension_numbers = #tpu.dot_dimension_numbers<[1], [0], [0], [1], [0, 0, 1, 1], [], []>} : vector<10x16xf32>, vector<16x8xf32>, vector<10x8xf32> -> vector<10x8xf32>
    %10 = vector.broadcast %2 : vector<10x1xf32> to vector<10x8xf32>
    %11 = arith.addf %9, %10 : vector<10x8xf32>
    %12 = math.tanh %11 : vector<10x8xf32>
    %cst_17 = arith.constant dense<0.000000e+00> : vector<5x8xf32>
    %13 = tpu.matmul %3, %12, %cst_17 {dimension_numbers = #tpu.dot_dimension_numbers<[1], [0], [0], [1], [0, 0, 1, 1], [], []>} : vector<5x10xf32>, vector<10x8xf32>, vector<5x8xf32> -> vector<5x8xf32>
    %14 = vector.broadcast %4 : vector<5x1xf32> to vector<5x8xf32>
    %15 = arith.addf %13, %14 : vector<5x8xf32>
    %16 = math.tanh %15 : vector<5x8xf32>
    %17 = vector.shape_cast %6 : vector<5x1xf32> to vector<5x1xf32>
    %18 = vector.broadcast %17 : vector<5x1xf32> to vector<5x8xf32>
    %cst_18 = arith.constant dense<0.000000e+00> : vector<5x8xf32>
    %19 = tpu.matmul %5, %16, %cst_18 {dimension_numbers = #tpu.dot_dimension_numbers<[1], [0], [0], [1], [0, 0, 1, 1], [], []>} : vector<5x5xf32>, vector<5x8xf32>, vector<5x8xf32> -> vector<5x8xf32>
    %20 = arith.addf %19, %18 : vector<5x8xf32>
    %21 = math.tanh %20 : vector<5x8xf32>
    %cst_19 = arith.constant dense<0.000000e+00> : vector<5x8xf32>
    %22 = tpu.matmul %5, %21, %cst_19 {dimension_numbers = #tpu.dot_dimension_numbers<[1], [0], [0], [1], [0, 0, 1, 1], [], []>} : vector<5x5xf32>, vector<5x8xf32>, vector<5x8xf32> -> vector<5x8xf32>
    %23 = arith.addf %22, %18 : vector<5x8xf32>
    %24 = math.tanh %23 : vector<5x8xf32>
    %cst_20 = arith.constant dense<0.000000e+00> : vector<5x8xf32>
    %25 = tpu.matmul %5, %24, %cst_20 {dimension_numbers = #tpu.dot_dimension_numbers<[1], [0], [0], [1], [0, 0, 1, 1], [], []>} : vector<5x5xf32>, vector<5x8xf32>, vector<5x8xf32> -> vector<5x8xf32>
    %26 = arith.addf %25, %18 : vector<5x8xf32>
    %27 = math.tanh %26 : vector<5x8xf32>
    %cst_21 = arith.constant dense<0.000000e+00> : vector<5x8xf32>
    %28 = tpu.matmul %5, %27, %cst_21 {dimension_numbers = #tpu.dot_dimension_numbers<[1], [0], [0], [1], [0, 0, 1, 1], [], []>} : vector<5x5xf32>, vector<5x8xf32>, vector<5x8xf32> -> vector<5x8xf32>
    %29 = arith.addf %28, %18 : vector<5x8xf32>
    %30 = math.tanh %29 : vector<5x8xf32>
    %cst_22 = arith.constant dense<0.000000e+00> : vector<2x8xf32>
    %31 = tpu.matmul %7, %30, %cst_22 {dimension_numbers = #tpu.dot_dimension_numbers<[1], [0], [0], [1], [0, 0, 1, 1], [], []>} : vector<2x5xf32>, vector<5x8xf32>, vector<2x8xf32> -> vector<2x8xf32>
    %32 = vector.broadcast %8 : vector<2x1xf32> to vector<2x8xf32>
    %33 = arith.addf %31, %32 : vector<2x8xf32>
    %c0_23 = arith.constant 0 : index
    %c0_24 = arith.constant 0 : index
    %34 = vector.load %arg10[%c0_23, %c0_24] : memref<2x8xf32, #tpu.memory_space<vmem>>, vector<2x8xf32>
    tpu.vector_store %arg10[%c0_23, %c0_24], %33 {strides = array<i32>} : memref<2x8xf32, #tpu.memory_space<vmem>>, vector<2x8xf32>,
    return
  }
  func.func @transform_0(%arg0: i32) -> (i32, i32) {
    %c0_i32 = arith.constant 0 : i32
    %c0_i32_0 = arith.constant 0 : i32
    return %c0_i32, %arg0 : i32, i32
  }
  func.func @transform_1(%arg0: i32) -> (i32, i32) {
    %c0_i32 = arith.constant 0 : i32
    %c0_i32_0 = arith.constant 0 : i32
    %c0_i32_1 = arith.constant 0 : i32
    return %c0_i32, %c0_i32_0 : i32, i32
  }
  func.func @transform_2(%arg0: i32) -> (i32, i32) {
    %c0_i32 = arith.constant 0 : i32
    %c0_i32_0 = arith.constant 0 : i32
    %c0_i32_1 = arith.constant 0 : i32
    return %c0_i32, %c0_i32_0 : i32, i32
  }
  func.func @transform_3(%arg0: i32) -> (i32, i32) {
    %c0_i32 = arith.constant 0 : i32
    %c0_i32_0 = arith.constant 0 : i32
    %c0_i32_1 = arith.constant 0 : i32
    return %c0_i32, %c0_i32_0 : i32, i32
  }
  func.func @transform_4(%arg0: i32) -> (i32, i32) {
    %c0_i32 = arith.constant 0 : i32
    %c0_i32_0 = arith.constant 0 : i32
    %c0_i32_1 = arith.constant 0 : i32
    return %c0_i32, %c0_i32_0 : i32, i32
  }
  func.func @transform_5(%arg0: i32) -> (i32, i32) {
    %c0_i32 = arith.constant 0 : i32
    %c0_i32_0 = arith.constant 0 : i32
    %c0_i32_1 = arith.constant 0 : i32
    return %c0_i32, %c0_i32_0 : i32, i32
  }
  func.func @transform_6(%arg0: i32) -> (i32, i32) {
    %c0_i32 = arith.constant 0 : i32
    %c0_i32_0 = arith.constant 0 : i32
    %c0_i32_1 = arith.constant 0 : i32
    return %c0_i32, %c0_i32_0 : i32, i32
  }
  func.func @transform_7(%arg0: i32) -> (i32, i32) {
    %c0_i32 = arith.constant 0 : i32
    %c0_i32_0 = arith.constant 0 : i32
    %c0_i32_1 = arith.constant 0 : i32
    return %c0_i32, %c0_i32_0 : i32, i32
  }
  func.func @transform_8(%arg0: i32) -> (i32, i32) {
    %c0_i32 = arith.constant 0 : i32
    %c0_i32_0 = arith.constant 0 : i32
    %c0_i32_1 = arith.constant 0 : i32
    return %c0_i32, %c0_i32_0 : i32, i32
  }
  func.func @transform_9(%arg0: i32) -> (i32, i32) {
    %c0_i32 = arith.constant 0 : i32
    %c0_i32_0 = arith.constant 0 : i32
    return %c0_i32, %arg0 : i32, i32
  }
}

</mosaic_0001>

<llo_original>
// kernel: tpu_custom_call.1
$region0: #{tpu_custom_call.1}
  #allocation0 [shape = 'u32[]', space=smem, size = 0x4, offset = 0x4, fixed_abs, tag = 'smem constant byte address 0x4 - core index']
  #allocation1 [shape = 'u32[144,128]{1,0:T(1,128)}', space=vmem, size = 0x12000, scoped, tag = 'internal scratch']
  %s0 = inlined_call_operand.vmem [shape: f32[16,8], index: 0, kind: input, shape index: {}]
  %s1 = inlined_call_operand.vmem [shape: f32[10,16], index: 1, kind: input, shape index: {}]
  %s2 = inlined_call_operand.vmem [shape: f32[10,1], index: 2, kind: input, shape index: {}]
  %s3 = inlined_call_operand.vmem [shape: f32[5,10], index: 3, kind: input, shape index: {}]
  %s4 = inlined_call_operand.vmem [shape: f32[5,1], index: 4, kind: input, shape index: {}]
  %s5 = inlined_call_operand.vmem [shape: f32[5,5], index: 5, kind: input, shape index: {}]
  %s6 = inlined_call_operand.vmem [shape: f32[5,1], index: 6, kind: input, shape index: {}]
  %s7 = inlined_call_operand.vmem [shape: f32[2,5], index: 7, kind: input, shape index: {}]
  %s8 = inlined_call_operand.vmem [shape: f32[2,1], index: 8, kind: input, shape index: {}]
  %s9 = inlined_call_operand.hbm [shape: f32[2,8], index: 9, kind: output, shape index: {}]
  %s10 = sld [smem:[#allocation0]]
  $region46: #{tpu_custom_call.1} parent=0
    _
  %s12 = ssub.s32 1, %s10
  %s13 = scalar_select 0, %s12, %s10
  $region1: #{tpu_custom_call.1} parent=0
    #allocation2 [shape = 'u8[1024]{0}', space=vmem, size = 0x400, scoped, tag = 'output window, operand 0, single buffered']
    #allocation3 [shape = 's32[1]{0}', space=sflag, size = 0x4, scoped, tag = 'scoped memory for tpu_custom_call.1']
    %14 = vsyncpa [#allocation3], 0
    // Predicated region
    $region2: #{tpu_custom_call.1} parent=1 // pred_check
      _
    $region3: #{tpu_custom_call.1} parent=1 // pred_check_branch
      %16 = sbr.rel (0) target = $region5
    $region4: #{tpu_custom_call.1} parent=1 // pred_region
      _
    $region5: #{tpu_custom_call.1} parent=1 // pred_fallthru
      _
    // Predicated region
    $region6: #{tpu_custom_call.1} parent=1 // pred_check
      _
    $region7: #{tpu_custom_call.1} parent=1 // pred_check_branch
      %18 = sbr.rel (0) target = $region9
    $region8: #{tpu_custom_call.1} parent=1 // pred_region
      _
    $region9: #{tpu_custom_call.1} parent=1 // pred_fallthru
      _
    // Predicated region
    $region10: #{tpu_custom_call.1} parent=1 // pred_check
      _
    $region11: #{tpu_custom_call.1} parent=1 // pred_check_branch
      %20 = sbr.rel (0) target = $region13
    $region12: #{tpu_custom_call.1} parent=1 // pred_region
      _
    $region13: #{tpu_custom_call.1} parent=1 // pred_fallthru
      _
    // Predicated region
    $region14: #{tpu_custom_call.1} parent=1 // pred_check
      _
    $region15: #{tpu_custom_call.1} parent=1 // pred_check_branch
      %22 = sbr.rel (0) target = $region17
    $region16: #{tpu_custom_call.1} parent=1 // pred_region
      _
    $region17: #{tpu_custom_call.1} parent=1 // pred_fallthru
      _
    // Predicated region
    $region18: #{tpu_custom_call.1} parent=1 // pred_check
      _
    $region19: #{tpu_custom_call.1} parent=1 // pred_check_branch
      %24 = sbr.rel (0) target = $region21
    $region20: #{tpu_custom_call.1} parent=1 // pred_region
      _
    $region21: #{tpu_custom_call.1} parent=1 // pred_fallthru
      _
    // Predicated region
    $region22: #{tpu_custom_call.1} parent=1 // pred_check
      _
    $region23: #{tpu_custom_call.1} parent=1 // pred_check_branch
      %26 = sbr.rel (0) target = $region25
    $region24: #{tpu_custom_call.1} parent=1 // pred_region
      _
    $region25: #{tpu_custom_call.1} parent=1 // pred_fallthru
      _
    // Predicated region
    $region26: #{tpu_custom_call.1} parent=1 // pred_check
      _
    $region27: #{tpu_custom_call.1} parent=1 // pred_check_branch
      %28 = sbr.rel (0) target = $region29
    $region28: #{tpu_custom_call.1} parent=1 // pred_region
      _
    $region29: #{tpu_custom_call.1} parent=1 // pred_fallthru
      _
    // Predicated region
    $region30: #{tpu_custom_call.1} parent=1 // pred_check
      _
    $region31: #{tpu_custom_call.1} parent=1 // pred_check_branch
      %30 = sbr.rel (0) target = $region33
    $region32: #{tpu_custom_call.1} parent=1 // pred_region
      _
    $region33: #{tpu_custom_call.1} parent=1 // pred_fallthru
      _
    // Predicated region
    $region34: #{tpu_custom_call.1} parent=1 // pred_check
      _
    $region35: #{tpu_custom_call.1} parent=1 // pred_check_branch
      %32 = sbr.rel (0) target = $region37
    $region36: #{tpu_custom_call.1} parent=1 // pred_region
      _
    $region37: #{tpu_custom_call.1} parent=1 // pred_fallthru
      _
    %v33 = vld [vmem:[%s0] sm:$0xff]
    %v34 = vld [vmem:[%s0 + $0x8] sm:$0xff]
    %v35 = vld [vmem:[%s1] sm:$0xff]
    %v36 = vld [vmem:[%s1 + $0x8] sm:$0x3]
    %v37 = vld [vmem:[%s2] sm:$0xff]
    %v38 = vld [vmem:[%s2 + $0x8] sm:$0x3]
    %v39 = vld [vmem:[%s3] sm:$0x1f]
    %v40 = vld [vmem:[%s4] sm:$0x1f]
    %v41 = vld [vmem:[%s5] sm:$0x1f]
    %v42 = vld [vmem:[%s6] sm:$0x1f]
    %v43 = vld [vmem:[%s7] sm:$0x3]
    %v44 = vld [vmem:[%s8] sm:$0x3]
    %46 = vset.pattern.permute.xlu0 0
    %47 = vperm.xlu0 %46, %v37
    %v48 = vpop.permute.xlu0 %47
    %51 = vset.pattern.permute.xlu0 0
    %52 = vperm.xlu0 %51, %v38
    %v53 = vpop.permute.xlu0 %52
    %vm55 = vcmask 130048
    %v57 = vsel %vm55, %v35, 0
    %v60 = vsel %vm55, %v36, 0
    %62 = vmatprep.subr.mxu0 0.0
    %63 = vmatpush1.msra.mxu0 0.0
    %64 = vmatprep.subr.mxu0 0.0
    %65 = vmatpush1.msra.mxu0 0.0
    %66 = vmatprep.subr.mxu0 0.0
    %67 = vmatpush1.msra.mxu0 0.0
    %68 = vmatprep.subr.mxu0 0.0
    %69 = vmatpush1.msra.mxu0 0.0
    %70 = vmatprep.subr.mxu0 0.0
    %71 = vmatpush1.msra.mxu0 0.0
    %72 = vmatprep.subr.mxu0 0.0
    %73 = vmatpush1.msra.mxu0 0.0
    %74 = vmatprep.subr.mxu0 0.0
    %75 = vmatpush1.msra.mxu0 0.0
    %76 = vmatprep.subr.mxu0 0.0
    %77 = vmatpush1.msra.mxu0 0.0
    %78 = vmatprep.subr.mxu0 0.0
    %79 = vmatpush1.msra.mxu0 0.0
    %80 = vmatprep.subr.mxu0 0.0
    %81 = vmatpush1.msra.mxu0 0.0
    %82 = vmatprep.subr.mxu0 0.0
    %83 = vmatpush1.msra.mxu0 0.0
    %84 = vmatprep.subr.mxu0 0.0
    %85 = vmatpush1.msra.mxu0 0.0
    %86 = vmatprep.subr.mxu0 0.0
    %87 = vmatpush1.msra.mxu0 0.0
    %88 = vmatprep.subr.mxu0 0.0
    %89 = vmatpush1.msra.mxu0 0.0
    %90 = vmatprep.subr.mxu0 0.0
    %91 = vmatpush1.msra.mxu0 %v34
    %92 = vmatprep.subr.mxu0 0.0
    %93 = vmatpush1.msra.mxu0 %v33
    %94 = vmatprep.subr.mxu0 0.0
    %95 = vmatpush2.msra.mxu0 0.0
    %96 = vmatprep.subr.mxu0 0.0
    %97 = vmatpush2.msra.mxu0 0.0
    %98 = vmatprep.subr.mxu0 0.0
    %99 = vmatpush2.msra.mxu0 0.0
    %100 = vmatprep.subr.mxu0 0.0
    %101 = vmatpush2.msra.mxu0 0.0
    %102 = vmatprep.subr.mxu0 0.0
    %103 = vmatpush2.msra.mxu0 0.0
    %104 = vmatprep.subr.mxu0 0.0
    %105 = vmatpush2.msra.mxu0 0.0
    %106 = vmatprep.subr.mxu0 0.0
    %107 = vmatpush2.msra.mxu0 0.0
    %108 = vmatprep.subr.mxu0 0.0
    %109 = vmatpush2.msra.mxu0 0.0
    %110 = vmatprep.subr.mxu0 0.0
    %111 = vmatpush2.msra.mxu0 0.0
    %112 = vmatprep.subr.mxu0 0.0
    %113 = vmatpush2.msra.mxu0 0.0
    %114 = vmatprep.subr.mxu0 0.0
    %115 = vmatpush2.msra.mxu0 0.0
    %116 = vmatprep.subr.mxu0 0.0
    %117 = vmatpush2.msra.mxu0 0.0
    %118 = vmatprep.subr.mxu0 0.0
    %119 = vmatpush2.msra.mxu0 0.0
    %120 = vmatprep.subr.mxu0 0.0
    %121 = vmatpush2.msra.mxu0 0.0
    %122 = vmatprep.subr.mxu0 0.0
    %123 = vmatpush2.msra.mxu0 0.0
    %124 = vmatprep.subr.mxu0 0.0
    %125 = vmatpush2.msra.mxu0 0.0
    %126 = vmatprep.mubr.f32.mxu0 0.0
    %127 = vmatmul.mubr.f32.gmra.mxu0 %v57
    %v128 = vpop.f32.mrf.mxu0
    %v129 = vadd.f32 %v48, %v128
    %v130 = vpop.f32.mrf.mxu0
    %131 = vmatprep.mubr.f32.mxu0 0.0
    %132 = vmatmul.mubr.f32.gmra.mxu0 %v60
    %v133 = vpop.f32.mrf.mxu0
    %v134 = vadd.f32 %v53, %v133
    %v135 = vpop.f32.mrf.mxu0
    %136 = vdwg.mxu0
    %v137 = vtanh.pop %v129
    %v138 = vtanh.pop %v134
    %140 = vset.pattern.permute.xlu0 0
    %141 = vperm.xlu0 %140, %v40
    %v142 = vpop.permute.xlu0 %141
    %vm144 = vcmask 80896
    %v146 = vsel %vm144, %v39, 0
    %vm148 = vcmask 1041408
    %v150 = vsel %vm148, %v138, 0
    %152 = vmatprep.subr.mxu0 0.0
    %153 = vmatpush1.msra.mxu0 0.0
    %154 = vmatprep.subr.mxu0 0.0
    %155 = vmatpush1.msra.mxu0 0.0
    %156 = vmatprep.subr.mxu0 0.0
    %157 = vmatpush1.msra.mxu0 0.0
    %158 = vmatprep.subr.mxu0 0.0
    %159 = vmatpush1.msra.mxu0 0.0
    %160 = vmatprep.subr.mxu0 0.0
    %161 = vmatpush1.msra.mxu0 0.0
    %162 = vmatprep.subr.mxu0 0.0
    %163 = vmatpush1.msra.mxu0 0.0
    %164 = vmatprep.subr.mxu0 0.0
    %165 = vmatpush1.msra.mxu0 0.0
    %166 = vmatprep.subr.mxu0 0.0
    %167 = vmatpush1.msra.mxu0 0.0
    %168 = vmatprep.subr.mxu0 0.0
    %169 = vmatpush1.msra.mxu0 0.0
    %170 = vmatprep.subr.mxu0 0.0
    %171 = vmatpush1.msra.mxu0 0.0
    %172 = vmatprep.subr.mxu0 0.0
    %173 = vmatpush1.msra.mxu0 0.0
    %174 = vmatprep.subr.mxu0 0.0
    %175 = vmatpush1.msra.mxu0 0.0
    %176 = vmatprep.subr.mxu0 0.0
    %177 = vmatpush1.msra.mxu0 0.0
    %178 = vmatprep.subr.mxu0 0.0
    %179 = vmatpush1.msra.mxu0 0.0
    %180 = vmatprep.subr.mxu0 0.0
    %181 = vmatpush1.msra.mxu0 %v150
    %182 = vmatprep.subr.mxu0 0.0
    %183 = vmatpush1.msra.mxu0 %v137
    %184 = vmatprep.subr.mxu0 0.0
    %185 = vmatpush2.msra.mxu0 0.0
    %186 = vmatprep.subr.mxu0 0.0
    %187 = vmatpush2.msra.mxu0 0.0
    %188 = vmatprep.subr.mxu0 0.0
    %189 = vmatpush2.msra.mxu0 0.0
    %190 = vmatprep.subr.mxu0 0.0
    %191 = vmatpush2.msra.mxu0 0.0
    %192 = vmatprep.subr.mxu0 0.0
    %193 = vmatpush2.msra.mxu0 0.0
    %194 = vmatprep.subr.mxu0 0.0
    %195 = vmatpush2.msra.mxu0 0.0
    %196 = vmatprep.subr.mxu0 0.0
    %197 = vmatpush2.msra.mxu0 0.0
    %198 = vmatprep.subr.mxu0 0.0
    %199 = vmatpush2.msra.mxu0 0.0
    %200 = vmatprep.subr.mxu0 0.0
    %201 = vmatpush2.msra.mxu0 0.0
    %202 = vmatprep.subr.mxu0 0.0
    %203 = vmatpush2.msra.mxu0 0.0
    %204 = vmatprep.subr.mxu0 0.0
    %205 = vmatpush2.msra.mxu0 0.0
    %206 = vmatprep.subr.mxu0 0.0
    %207 = vmatpush2.msra.mxu0 0.0
    %208 = vmatprep.subr.mxu0 0.0
    %209 = vmatpush2.msra.mxu0 0.0
    %210 = vmatprep.subr.mxu0 0.0
    %211 = vmatpush2.msra.mxu0 0.0
    %212 = vmatprep.subr.mxu0 0.0
    %213 = vmatpush2.msra.mxu0 0.0
    %214 = vmatprep.subr.mxu0 0.0
    %215 = vmatpush2.msra.mxu0 0.0
    %216 = vmatprep.mubr.f32.mxu0 0.0
    %217 = vmatmul.mubr.f32.gmra.mxu0 %v146
    %v218 = vpop.f32.mrf.mxu0
    %v219 = vadd.f32 %v142, %v218
    %v220 = vpop.f32.mrf.mxu0
    %221 = vdwg.mxu0
    %v222 = vtanh.pop %v219
    %224 = vset.pattern.permute.xlu0 0
    %225 = vperm.xlu0 %224, %v42
    %v226 = vpop.permute.xlu0 %225
    %vm228 = vcmask 39936
    %v230 = vsel %vm228, %v41, 0
    %vm232 = vcmask 1044480
    %v234 = vsel %vm232, %v222, 0
    %236 = vmatprep.subr.mxu0 0.0
    %237 = vmatpush1.msra.mxu0 0.0
    %238 = vmatprep.subr.mxu0 0.0
    %239 = vmatpush1.msra.mxu0 0.0
    %240 = vmatprep.subr.mxu0 0.0
    %241 = vmatpush1.msra.mxu0 0.0
    %242 = vmatprep.subr.mxu0 0.0
    %243 = vmatpush1.msra.mxu0 0.0
    %244 = vmatprep.subr.mxu0 0.0
    %245 = vmatpush1.msra.mxu0 0.0
    %246 = vmatprep.subr.mxu0 0.0
    %247 = vmatpush1.msra.mxu0 0.0
    %248 = vmatprep.subr.mxu0 0.0
    %249 = vmatpush1.msra.mxu0 0.0
    %250 = vmatprep.subr.mxu0 0.0
    %251 = vmatpush1.msra.mxu0 0.0
    %252 = vmatprep.subr.mxu0 0.0
    %253 = vmatpush1.msra.mxu0 0.0
    %254 = vmatprep.subr.mxu0 0.0
    %255 = vmatpush1.msra.mxu0 0.0
    %256 = vmatprep.subr.mxu0 0.0
    %257 = vmatpush1.msra.mxu0 0.0
    %258 = vmatprep.subr.mxu0 0.0
    %259 = vmatpush1.msra.mxu0 0.0
    %260 = vmatprep.subr.mxu0 0.0
    %261 = vmatpush1.msra.mxu0 0.0
    %262 = vmatprep.subr.mxu0 0.0
    %263 = vmatpush1.msra.mxu0 0.0
    %264 = vmatprep.subr.mxu0 0.0
    %265 = vmatpush1.msra.mxu0 0.0
    %266 = vmatprep.subr.mxu0 0.0
    %267 = vmatpush1.msra.mxu0 %v234
    %268 = vmatprep.subr.mxu0 0.0
    %269 = vmatpush2.msra.mxu0 0.0
    %270 = vmatprep.subr.mxu0 0.0
    %271 = vmatpush2.msra.mxu0 0.0
    %272 = vmatprep.subr.mxu0 0.0
    %273 = vmatpush2.msra.mxu0 0.0
    %274 = vmatprep.subr.mxu0 0.0
    %275 = vmatpush2.msra.mxu0 0.0
    %276 = vmatprep.subr.mxu0 0.0
    %277 = vmatpush2.msra.mxu0 0.0
    %278 = vmatprep.subr.mxu0 0.0
    %279 = vmatpush2.msra.mxu0 0.0
    %280 = vmatprep.subr.mxu0 0.0
    %281 = vmatpush2.msra.mxu0 0.0
    %282 = vmatprep.subr.mxu0 0.0
    %283 = vmatpush2.msra.mxu0 0.0
    %284 = vmatprep.subr.mxu0 0.0
    %285 = vmatpush2.msra.mxu0 0.0
    %286 = vmatprep.subr.mxu0 0.0
    %287 = vmatpush2.msra.mxu0 0.0
    %288 = vmatprep.subr.mxu0 0.0
    %289 = vmatpush2.msra.mxu0 0.0
    %290 = vmatprep.subr.mxu0 0.0
    %291 = vmatpush2.msra.mxu0 0.0
    %292 = vmatprep.subr.mxu0 0.0
    %293 = vmatpush2.msra.mxu0 0.0
    %294 = vmatprep.subr.mxu0 0.0
    %295 = vmatpush2.msra.mxu0 0.0
    %296 = vmatprep.subr.mxu0 0.0
    %297 = vmatpush2.msra.mxu0 0.0
    %298 = vmatprep.subr.mxu0 0.0
    %299 = vmatpush2.msra.mxu0 0.0
    %300 = vmatprep.mubr.f32.mxu0 0.0
    %301 = vmatmul.mubr.f32.gmra.mxu0 %v230
    %v302 = vpop.f32.mrf.mxu0
    %v303 = vadd.f32 %v226, %v302
    %v304 = vpop.f32.mrf.mxu0
    %305 = vdwg.mxu0
    %v306 = vtanh.pop %v303
    %v308 = vsel %vm232, %v306, 0
    %310 = vmatprep.subr.mxu0 0.0
    %311 = vmatpush1.msra.mxu0 0.0
    %312 = vmatprep.subr.mxu0 0.0
    %313 = vmatpush1.msra.mxu0 0.0
    %314 = vmatprep.subr.mxu0 0.0
    %315 = vmatpush1.msra.mxu0 0.0
    %316 = vmatprep.subr.mxu0 0.0
    %317 = vmatpush1.msra.mxu0 0.0
    %318 = vmatprep.subr.mxu0 0.0
    %319 = vmatpush1.msra.mxu0 0.0
    %320 = vmatprep.subr.mxu0 0.0
    %321 = vmatpush1.msra.mxu0 0.0
    %322 = vmatprep.subr.mxu0 0.0
    %323 = vmatpush1.msra.mxu0 0.0
    %324 = vmatprep.subr.mxu0 0.0
    %325 = vmatpush1.msra.mxu0 0.0
    %326 = vmatprep.subr.mxu0 0.0
    %327 = vmatpush1.msra.mxu0 0.0
    %328 = vmatprep.subr.mxu0 0.0
    %329 = vmatpush1.msra.mxu0 0.0
    %330 = vmatprep.subr.mxu0 0.0
    %331 = vmatpush1.msra.mxu0 0.0
    %332 = vmatprep.subr.mxu0 0.0
    %333 = vmatpush1.msra.mxu0 0.0
    %334 = vmatprep.subr.mxu0 0.0
    %335 = vmatpush1.msra.mxu0 0.0
    %336 = vmatprep.subr.mxu0 0.0
    %337 = vmatpush1.msra.mxu0 0.0
    %338 = vmatprep.subr.mxu0 0.0
    %339 = vmatpush1.msra.mxu0 0.0
    %340 = vmatprep.subr.mxu0 0.0
    %341 = vmatpush1.msra.mxu0 %v308
    %342 = vmatprep.subr.mxu0 0.0
    %343 = vmatpush2.msra.mxu0 0.0
    %344 = vmatprep.subr.mxu0 0.0
    %345 = vmatpush2.msra.mxu0 0.0
    %346 = vmatprep.subr.mxu0 0.0
    %347 = vmatpush2.msra.mxu0 0.0
    %348 = vmatprep.subr.mxu0 0.0
    %349 = vmatpush2.msra.mxu0 0.0
    %350 = vmatprep.subr.mxu0 0.0
    %351 = vmatpush2.msra.mxu0 0.0
    %352 = vmatprep.subr.mxu0 0.0
    %353 = vmatpush2.msra.mxu0 0.0
    %354 = vmatprep.subr.mxu0 0.0
    %355 = vmatpush2.msra.mxu0 0.0
    %356 = vmatprep.subr.mxu0 0.0
    %357 = vmatpush2.msra.mxu0 0.0
    %358 = vmatprep.subr.mxu0 0.0
    %359 = vmatpush2.msra.mxu0 0.0
    %360 = vmatprep.subr.mxu0 0.0
    %361 = vmatpush2.msra.mxu0 0.0
    %362 = vmatprep.subr.mxu0 0.0
    %363 = vmatpush2.msra.mxu0 0.0
    %364 = vmatprep.subr.mxu0 0.0
    %365 = vmatpush2.msra.mxu0 0.0
    %366 = vmatprep.subr.mxu0 0.0
    %367 = vmatpush2.msra.mxu0 0.0
    %368 = vmatprep.subr.mxu0 0.0
    %369 = vmatpush2.msra.mxu0 0.0
    %370 = vmatprep.subr.mxu0 0.0
    %371 = vmatpush2.msra.mxu0 0.0
    %372 = vmatprep.subr.mxu0 0.0
    %373 = vmatpush2.msra.mxu0 0.0
    %374 = vmatprep.mubr.f32.mxu0 0.0
    %375 = vmatmul.mubr.f32.gmra.mxu0 %v230
    %v376 = vpop.f32.mrf.mxu0
    %v377 = vadd.f32 %v226, %v376
    %v378 = vpop.f32.mrf.mxu0
    %379 = vdwg.mxu0
    %v380 = vtanh.pop %v377
    %v382 = vsel %vm232, %v380, 0
    %384 = vmatprep.subr.mxu0 0.0
    %385 = vmatpush1.msra.mxu0 0.0
    %386 = vmatprep.subr.mxu0 0.0
    %387 = vmatpush1.msra.mxu0 0.0
    %388 = vmatprep.subr.mxu0 0.0
    %389 = vmatpush1.msra.mxu0 0.0
    %390 = vmatprep.subr.mxu0 0.0
    %391 = vmatpush1.msra.mxu0 0.0
    %392 = vmatprep.subr.mxu0 0.0
    %393 = vmatpush1.msra.mxu0 0.0
    %394 = vmatprep.subr.mxu0 0.0
    %395 = vmatpush1.msra.mxu0 0.0
    %396 = vmatprep.subr.mxu0 0.0
    %397 = vmatpush1.msra.mxu0 0.0
    %398 = vmatprep.subr.mxu0 0.0
    %399 = vmatpush1.msra.mxu0 0.0
    %400 = vmatprep.subr.mxu0 0.0
    %401 = vmatpush1.msra.mxu0 0.0
    %402 = vmatprep.subr.mxu0 0.0
    %403 = vmatpush1.msra.mxu0 0.0
    %404 = vmatprep.subr.mxu0 0.0
    %405 = vmatpush1.msra.mxu0 0.0
    %406 = vmatprep.subr.mxu0 0.0
    %407 = vmatpush1.msra.mxu0 0.0
    %408 = vmatprep.subr.mxu0 0.0
    %409 = vmatpush1.msra.mxu0 0.0
    %410 = vmatprep.subr.mxu0 0.0
    %411 = vmatpush1.msra.mxu0 0.0
    %412 = vmatprep.subr.mxu0 0.0
    %413 = vmatpush1.msra.mxu0 0.0
    %414 = vmatprep.subr.mxu0 0.0
    %415 = vmatpush1.msra.mxu0 %v382
    %416 = vmatprep.subr.mxu0 0.0
    %417 = vmatpush2.msra.mxu0 0.0
    %418 = vmatprep.subr.mxu0 0.0
    %419 = vmatpush2.msra.mxu0 0.0
    %420 = vmatprep.subr.mxu0 0.0
    %421 = vmatpush2.msra.mxu0 0.0
    %422 = vmatprep.subr.mxu0 0.0
    %423 = vmatpush2.msra.mxu0 0.0
    %424 = vmatprep.subr.mxu0 0.0
    %425 = vmatpush2.msra.mxu0 0.0
    %426 = vmatprep.subr.mxu0 0.0
    %427 = vmatpush2.msra.mxu0 0.0
    %428 = vmatprep.subr.mxu0 0.0
    %429 = vmatpush2.msra.mxu0 0.0
    %430 = vmatprep.subr.mxu0 0.0
    %431 = vmatpush2.msra.mxu0 0.0
    %432 = vmatprep.subr.mxu0 0.0
    %433 = vmatpush2.msra.mxu0 0.0
    %434 = vmatprep.subr.mxu0 0.0
    %435 = vmatpush2.msra.mxu0 0.0
    %436 = vmatprep.subr.mxu0 0.0
    %437 = vmatpush2.msra.mxu0 0.0
    %438 = vmatprep.subr.mxu0 0.0
    %439 = vmatpush2.msra.mxu0 0.0
    %440 = vmatprep.subr.mxu0 0.0
    %441 = vmatpush2.msra.mxu0 0.0
    %442 = vmatprep.subr.mxu0 0.0
    %443 = vmatpush2.msra.mxu0 0.0
    %444 = vmatprep.subr.mxu0 0.0
    %445 = vmatpush2.msra.mxu0 0.0
    %446 = vmatprep.subr.mxu0 0.0
    %447 = vmatpush2.msra.mxu0 0.0
    %448 = vmatprep.mubr.f32.mxu0 0.0
    %449 = vmatmul.mubr.f32.gmra.mxu0 %v230
    %v450 = vpop.f32.mrf.mxu0
    %v451 = vadd.f32 %v226, %v450
    %v452 = vpop.f32.mrf.mxu0
    %453 = vdwg.mxu0
    %v454 = vtanh.pop %v451
    %v456 = vsel %vm232, %v454, 0
    %458 = vmatprep.subr.mxu0 0.0
    %459 = vmatpush1.msra.mxu0 0.0
    %460 = vmatprep.subr.mxu0 0.0
    %461 = vmatpush1.msra.mxu0 0.0
    %462 = vmatprep.subr.mxu0 0.0
    %463 = vmatpush1.msra.mxu0 0.0
    %464 = vmatprep.subr.mxu0 0.0
    %465 = vmatpush1.msra.mxu0 0.0
    %466 = vmatprep.subr.mxu0 0.0
    %467 = vmatpush1.msra.mxu0 0.0
    %468 = vmatprep.subr.mxu0 0.0
    %469 = vmatpush1.msra.mxu0 0.0
    %470 = vmatprep.subr.mxu0 0.0
    %471 = vmatpush1.msra.mxu0 0.0
    %472 = vmatprep.subr.mxu0 0.0
    %473 = vmatpush1.msra.mxu0 0.0
    %474 = vmatprep.subr.mxu0 0.0
    %475 = vmatpush1.msra.mxu0 0.0
    %476 = vmatprep.subr.mxu0 0.0
    %477 = vmatpush1.msra.mxu0 0.0
    %478 = vmatprep.subr.mxu0 0.0
    %479 = vmatpush1.msra.mxu0 0.0
    %480 = vmatprep.subr.mxu0 0.0
    %481 = vmatpush1.msra.mxu0 0.0
    %482 = vmatprep.subr.mxu0 0.0
    %483 = vmatpush1.msra.mxu0 0.0
    %484 = vmatprep.subr.mxu0 0.0
    %485 = vmatpush1.msra.mxu0 0.0
    %486 = vmatprep.subr.mxu0 0.0
    %487 = vmatpush1.msra.mxu0 0.0
    %488 = vmatprep.subr.mxu0 0.0
    %489 = vmatpush1.msra.mxu0 %v456
    %490 = vmatprep.subr.mxu0 0.0
    %491 = vmatpush2.msra.mxu0 0.0
    %492 = vmatprep.subr.mxu0 0.0
    %493 = vmatpush2.msra.mxu0 0.0
    %494 = vmatprep.subr.mxu0 0.0
    %495 = vmatpush2.msra.mxu0 0.0
    %496 = vmatprep.subr.mxu0 0.0
    %497 = vmatpush2.msra.mxu0 0.0
    %498 = vmatprep.subr.mxu0 0.0
    %499 = vmatpush2.msra.mxu0 0.0
    %500 = vmatprep.subr.mxu0 0.0
    %501 = vmatpush2.msra.mxu0 0.0
    %502 = vmatprep.subr.mxu0 0.0
    %503 = vmatpush2.msra.mxu0 0.0
    %504 = vmatprep.subr.mxu0 0.0
    %505 = vmatpush2.msra.mxu0 0.0
    %506 = vmatprep.subr.mxu0 0.0
    %507 = vmatpush2.msra.mxu0 0.0
    %508 = vmatprep.subr.mxu0 0.0
    %509 = vmatpush2.msra.mxu0 0.0
    %510 = vmatprep.subr.mxu0 0.0
    %511 = vmatpush2.msra.mxu0 0.0
    %512 = vmatprep.subr.mxu0 0.0
    %513 = vmatpush2.msra.mxu0 0.0
    %514 = vmatprep.subr.mxu0 0.0
    %515 = vmatpush2.msra.mxu0 0.0
    %516 = vmatprep.subr.mxu0 0.0
    %517 = vmatpush2.msra.mxu0 0.0
    %518 = vmatprep.subr.mxu0 0.0
    %519 = vmatpush2.msra.mxu0 0.0
    %520 = vmatprep.subr.mxu0 0.0
    %521 = vmatpush2.msra.mxu0 0.0
    %522 = vmatprep.mubr.f32.mxu0 0.0
    %523 = vmatmul.mubr.f32.gmra.mxu0 %v230
    %v524 = vpop.f32.mrf.mxu0
    %v525 = vadd.f32 %v226, %v524
    %v526 = vpop.f32.mrf.mxu0
    %527 = vdwg.mxu0
    %v528 = vtanh.pop %v525
    %530 = vset.pattern.permute.xlu0 0
    %531 = vperm.xlu0 %530, %v44
    %v532 = vpop.permute.xlu0 %531
    %v535 = vsel %vm228, %v43, 0
    %v538 = vsel %vm232, %v528, 0
    %540 = vmatprep.subr.mxu0 0.0
    %541 = vmatpush1.msra.mxu0 0.0
    %542 = vmatprep.subr.mxu0 0.0
    %543 = vmatpush1.msra.mxu0 0.0
    %544 = vmatprep.subr.mxu0 0.0
    %545 = vmatpush1.msra.mxu0 0.0
    %546 = vmatprep.subr.mxu0 0.0
    %547 = vmatpush1.msra.mxu0 0.0
    %548 = vmatprep.subr.mxu0 0.0
    %549 = vmatpush1.msra.mxu0 0.0
    %550 = vmatprep.subr.mxu0 0.0
    %551 = vmatpush1.msra.mxu0 0.0
    %552 = vmatprep.subr.mxu0 0.0
    %553 = vmatpush1.msra.mxu0 0.0
    %554 = vmatprep.subr.mxu0 0.0
    %555 = vmatpush1.msra.mxu0 0.0
    %556 = vmatprep.subr.mxu0 0.0
    %557 = vmatpush1.msra.mxu0 0.0
    %558 = vmatprep.subr.mxu0 0.0
    %559 = vmatpush1.msra.mxu0 0.0
    %560 = vmatprep.subr.mxu0 0.0
    %561 = vmatpush1.msra.mxu0 0.0
    %562 = vmatprep.subr.mxu0 0.0
    %563 = vmatpush1.msra.mxu0 0.0
    %564 = vmatprep.subr.mxu0 0.0
    %565 = vmatpush1.msra.mxu0 0.0
    %566 = vmatprep.subr.mxu0 0.0
    %567 = vmatpush1.msra.mxu0 0.0
    %568 = vmatprep.subr.mxu0 0.0
    %569 = vmatpush1.msra.mxu0 0.0
    %570 = vmatprep.subr.mxu0 0.0
    %571 = vmatpush1.msra.mxu0 %v538
    %572 = vmatprep.subr.mxu0 0.0
    %573 = vmatpush2.msra.mxu0 0.0
    %574 = vmatprep.subr.mxu0 0.0
    %575 = vmatpush2.msra.mxu0 0.0
    %576 = vmatprep.subr.mxu0 0.0
    %577 = vmatpush2.msra.mxu0 0.0
    %578 = vmatprep.subr.mxu0 0.0
    %579 = vmatpush2.msra.mxu0 0.0
    %580 = vmatprep.subr.mxu0 0.0
    %581 = vmatpush2.msra.mxu0 0.0
    %582 = vmatprep.subr.mxu0 0.0
    %583 = vmatpush2.msra.mxu0 0.0
    %584 = vmatprep.subr.mxu0 0.0
    %585 = vmatpush2.msra.mxu0 0.0
    %586 = vmatprep.subr.mxu0 0.0
    %587 = vmatpush2.msra.mxu0 0.0
    %588 = vmatprep.subr.mxu0 0.0
    %589 = vmatpush2.msra.mxu0 0.0
    %590 = vmatprep.subr.mxu0 0.0
    %591 = vmatpush2.msra.mxu0 0.0
    %592 = vmatprep.subr.mxu0 0.0
    %593 = vmatpush2.msra.mxu0 0.0
    %594 = vmatprep.subr.mxu0 0.0
    %595 = vmatpush2.msra.mxu0 0.0
    %596 = vmatprep.subr.mxu0 0.0
    %597 = vmatpush2.msra.mxu0 0.0
    %598 = vmatprep.subr.mxu0 0.0
    %599 = vmatpush2.msra.mxu0 0.0
    %600 = vmatprep.subr.mxu0 0.0
    %601 = vmatpush2.msra.mxu0 0.0
    %602 = vmatprep.subr.mxu0 0.0
    %603 = vmatpush2.msra.mxu0 0.0
    %604 = vmatprep.mubr.f32.mxu0 0.0
    %605 = vmatmul.mubr.f32.gmra.mxu0 %v535
    %v606 = vpop.f32.mrf.mxu0
    %v607 = vadd.f32 %v532, %v606
    %v608 = vpop.f32.mrf.mxu0
    %609 = vdwg.mxu0
    %vm610 = vcmask 58368
    %611 = vst.msk [vmem:[#allocation2] sm:$0x3] %vm610, %v607
    // Predicated region
    $region38: #{tpu_custom_call.1} parent=1 // pred_check
      _
    $region39: #{tpu_custom_call.1} parent=1 // pred_check_branch
      %613 = sbr.rel (0) target = $region41
    $region40: #{tpu_custom_call.1} parent=1 // pred_region
      %s615 = ssub.s32 32, 32
      %616 = vsyncadd [#allocation3], %s615
      %s618 = sshll.u32 [#allocation2], 4
      %s619 = int_to_ptr.vmem [resolvable:$true] %s618
      %621 = dma.vmem_to_hbm [thread:$0]  %s619, 32, %s9, [#allocation3]
    $region41: #{tpu_custom_call.1} parent=1 // pred_fallthru
      _
    // Predicated region
    $region42: #{tpu_custom_call.1} parent=1 // pred_check
      _
    $region43: #{tpu_custom_call.1} parent=1 // pred_check_branch
      %623 = sbr.rel (0) target = $region45
    $region44: #{tpu_custom_call.1} parent=1 // pred_region
      %624 = dma.done [#allocation3], 32
    $region45: #{tpu_custom_call.1} parent=1 // pred_fallthru
      _
    %625 = vsyncpa [#allocation3], 1

</llo_original>
